<compile_context>
chip_gen: v7x
topology: tpu7x:2x2x1
jax: 0.10.0
libtpu: 0.0.40
codegen_flags: <defaults>
</compile_context>

<pallas_src>
import jax
import jax.numpy as jnp
import numpy as np
from jax.experimental import pallas as pl
from jax.experimental.pallas import tpu as pltpu


def _round_up(x, m):
    return ((x + m - 1) // m) * m


def pack_params(params, *, num_latent, input_size, hidden_size, output_size):
    """Pack (w1, b1, w2, b2, w3, b3) into one lane-dense (rows, 128) f32 slab.

    Weights are stored transposed relative to torch (as (in, out)) so the
    kernel computes x @ W + b.  w1 is split into its x-part (first num_latent
    rows) and y-part (remaining input_size rows) so the concat fuses into
    layer 1.  The hidden/output feature axis is zero-padded to L = 128 lanes,
    but the *contraction* rows of w2/w3 are only padded to
    kh = round_up(hidden_size, 8) rows so layers 2/3 contract K = kh, not 128.
    """
    w1, b1, w2, b2, w3, b3 = [np.asarray(p, np.float32) for p in params]
    L = max(_round_up(hidden_size, 128), _round_up(output_size, 128))
    r_lat = _round_up(num_latent, 8)
    r_in = _round_up(input_size, 8)
    kh = _round_up(hidden_size, 8)

    offs = {}
    o = 0
    offs["w1x"] = o; o += r_lat
    offs["w1y"] = o; o += r_in
    offs["w2"] = o;  o += kh
    offs["w3"] = o;  o += kh
    offs["b1"] = o;  o += 8
    offs["b2"] = o;  o += 8
    offs["b3"] = o;  o += 8
    rows = o

    buf = np.zeros((rows, L), np.float32)
    buf[offs["w1x"]:offs["w1x"] + num_latent, :hidden_size] = w1[:num_latent]
    buf[offs["w1y"]:offs["w1y"] + input_size, :hidden_size] = w1[num_latent:]
    buf[offs["w2"]:offs["w2"] + hidden_size, :hidden_size] = w2
    buf[offs["w3"]:offs["w3"] + hidden_size, :output_size] = w3
    buf[offs["b1"], :hidden_size] = b1.reshape(-1)
    buf[offs["b2"], :hidden_size] = b2.reshape(-1)
    buf[offs["b3"], :output_size] = b3.reshape(-1)

    offs["L"] = L
    offs["rows"] = rows
    offs["kh"] = kh
    return jnp.asarray(buf), offs


def _make_kernel(num_latent, input_size, output_size, offs):
    o_w1x, o_w1y = offs["w1x"], offs["w1y"]
    o_w2, o_w3 = offs["w2"], offs["w3"]
    o_b1, o_b2, o_b3 = offs["b1"], offs["b2"], offs["b3"]
    kh = offs["kh"]

    def _contract(a, w):
        # K == 1 contraction is a broadcast multiply (pure VPU, no degenerate
        # MXU pass); larger K goes to the MXU in bf16 with f32 accumulation.
        if a.shape[1] == 1:
            return a * w
        return jnp.dot(a.astype(jnp.bfloat16), w.astype(jnp.bfloat16),
                       preferred_element_type=jnp.float32)

    def kernel(x_ref, y_ref, p_ref, o_ref):
        # Layer 1: fused concat -> x @ W1x + y @ W1y + b1, then ReLU.
        # (Bias add / ReLU stay f32: v5e's VPU has no bf16.)
        h1 = _contract(x_ref[...], p_ref[o_w1x:o_w1x + num_latent, :])
        h1 = h1 + _contract(y_ref[...], p_ref[o_w1y:o_w1y + input_size, :])
        h1 = jnp.maximum(h1 + p_ref[o_b1:o_b1 + 1, :], 0.0)
        # Layers 2/3: only lanes < hidden_size of h1/h2 are nonzero, so
        # contract just the first kh (=8) lanes against kh-row weight slabs
        # (K = 8 instead of 128 -> ~16x fewer MXU pushes).
        h2 = _contract(h1[:, :kh], p_ref[o_w2:o_w2 + kh, :])
        h2 = jnp.maximum(h2 + p_ref[o_b2:o_b2 + 1, :], 0.0)
        out = _contract(h2[:, :kh], p_ref[o_w3:o_w3 + kh, :])
        out = out + p_ref[o_b3:o_b3 + 1, :]
        # Narrow store: only the real output columns go back to HBM.
        o_ref[...] = out[:, :output_size].astype(o_ref.dtype)

    return kernel


def _pick_batch_tiling(B, max_batch_tile):
    """Choose (batch_tile, padded_batch) so that the tile is a multiple of 8
    and <= max_batch_tile, the grid has >= 2 (and an even number of) parallel
    steps whenever B > 8 (both v7x TensorCores get work), and the padded tail
    stays at most ~8 rows per grid step."""
    B8 = _round_up(max(B, 1), 8)
    n = -(-B8 // max_batch_tile)          # tiles needed at the max tile size
    if B8 > 8:
        n = max(n, 2)
        if n % 2:
            n += 1
    bt = _round_up(-(-B8 // n), 8)
    return bt, n * bt


def make_cvae_decoder_forward(params, *, input_size=8, hidden_size=5,
                              output_size=1, num_latent=1, max_batch_tile=1024):
    """Build a jitted forward(x, y) -> (B, output_size) for CVAEDecoder."""
    packed, offs = pack_params(params, num_latent=num_latent,
                               input_size=input_size,
                               hidden_size=hidden_size,
                               output_size=output_size)
    kernel = _make_kernel(num_latent, input_size, output_size, offs)
    L, rows = offs["L"], offs["rows"]

    @jax.jit
    def forward(x, y):
        B = x.shape[0]
        bt, bp = _pick_batch_tiling(B, max_batch_tile)
        if bp != B:
            x = jnp.pad(x, ((0, bp - B), (0, 0)))
            y = jnp.pad(y, ((0, bp - B), (0, 0)))

        out = pl.pallas_call(
            kernel,
            out_shape=jax.ShapeDtypeStruct((bp, output_size), jnp.float32),
            grid_spec=pltpu.PrefetchScalarGridSpec(
                num_scalar_prefetch=0,
                grid=(bp // bt,),
                in_specs=[
                    pl.BlockSpec((bt, num_latent), lambda i: (i, 0)),
                    pl.BlockSpec((bt, input_size), lambda i: (i, 0)),
                    # Single packed parameter slab (~28 KB), resident across
                    # tiles (constant index_map).  Left default-buffered: the
                    # redundant second buffer is only ~28 KB of VMEM.
                    pl.BlockSpec((rows, L), lambda i: (0, 0)),
                ],
                out_specs=pl.BlockSpec((bt, output_size), lambda i: (i, 0)),
            ),
            compiler_params=pltpu.CompilerParams(
                dimension_semantics=("parallel",)),
        )(x, y, packed)
        return out[:B]

    return forward


def init_params(key, input_size=8, hidden_size=5, output_size=1, num_latent=1):
    """Deterministic synthetic parameters.

    PyTorch Linear stores weight as (out, in) and computes x @ W.T + b; here we
    store W already transposed as (in, out) so the math is x @ W + b.
    """
    in_dim = num_latent + input_size
    ks = jax.random.split(key, 6)
    w1 = jax.random.normal(ks[0], (in_dim, hidden_size), jnp.float32) * 0.3
    b1 = jax.random.normal(ks[1], (1, hidden_size), jnp.float32) * 0.1
    w2 = jax.random.normal(ks[2], (hidden_size, hidden_size), jnp.float32) * 0.3
    b2 = jax.random.normal(ks[3], (1, hidden_size), jnp.float32) * 0.1
    w3 = jax.random.normal(ks[4], (hidden_size, output_size), jnp.float32) * 0.3
    b3 = jax.random.normal(ks[5], (1, output_size), jnp.float32) * 0.1
    return (w1, b1, w2, b2, w3, b3)


def _reference(x, y, params):
    w1, b1, w2, b2, w3, b3 = params
    xx = jnp.concatenate([x, y], axis=1)
    h1 = jnp.maximum(xx @ w1 + b1, 0.0)
    h2 = jnp.maximum(h1 @ w2 + b2, 0.0)
    return h2 @ w3 + b3


if __name__ == "__main__":
    input_size, hidden_size, output_size, num_latent = 8, 5, 1, 1

    key = jax.random.PRNGKey(0)
    kp = jax.random.fold_in(key, 0)
    params = init_params(kp, input_size, hidden_size, output_size, num_latent)

    forward = make_cvae_decoder_forward(
        params, input_size=input_size, hidden_size=hidden_size,
        output_size=output_size, num_latent=num_latent)

    # batch=64 -> clean 2-step parallel grid; batch=13 -> exercises padded tail.
    for batch in (64, 13):
        kx, ky = jax.random.split(jax.random.fold_in(key, batch))
        x = jax.random.normal(kx, (batch, num_latent), jnp.float32)   # latent z
        y = jax.random.normal(ky, (batch, input_size), jnp.float32)   # condition

        out = jax.block_until_ready(forward(x, y))
        ref = _reference(x, y, params)

        assert out.shape == (batch, output_size), out.shape
        # bf16 MXU matmuls (f32 accumulation) -> ~1e-2 relative agreement.
        assert jnp.allclose(out, ref, atol=5e-2, rtol=5e-2), "mismatch vs reference"

    print("KERNEL_OK")
</pallas_src>

<mosaic_0001>
module attributes {stable_mosaic.version = 11 : i64} {
  func.func @kernel(%arg0: i32, %arg1: memref<32x1xf32, #tpu.memory_space<vmem>>, %arg2: memref<32x8xf32, #tpu.memory_space<vmem>>, %arg3: memref<56x128xf32, #tpu.memory_space<vmem>>, %arg4: memref<32x1xf32, #tpu.memory_space<vmem>>) attributes {dimension_semantics = [#tpu.dimension_semantics<parallel>], iteration_bounds = array<i64: 2>, scalar_prefetch = 0 : i64, scratch_operands = 0 : i64, tpu.core_type = #tpu.core_type<tc>, window_params = [{transform_indices = @transform_0, window_bounds = array<i64: 32, 1>}, {transform_indices = @transform_1, window_bounds = array<i64: 32, 8>}, {pipeline_mode = #tpu.pipeline_mode<synchronous>, transform_indices = @transform_2, window_bounds = array<i64: 56, 128>}, {transform_indices = @transform_3, window_bounds = array<i64: 32, 1>}]} {
    %c0 = arith.constant 0 : index
    %c0_0 = arith.constant 0 : index
    %0 = vector.load %arg1[%c0, %c0_0] : memref<32x1xf32, #tpu.memory_space<vmem>>, vector<32x1xf32>
    %c0_1 = arith.constant 0 : index
    %c0_2 = arith.constant 0 : index
    %1 = vector.load %arg3[%c0_1, %c0_2] : memref<56x128xf32, #tpu.memory_space<vmem>>, vector<1x128xf32>
    %2 = vector.broadcast %0 : vector<32x1xf32> to vector<32x128xf32>
    %3 = vector.broadcast %1 : vector<1x128xf32> to vector<32x128xf32>
    %4 = arith.mulf %2, %3 : vector<32x128xf32>
    %c0_3 = arith.constant 0 : index
    %c0_4 = arith.constant 0 : index
    %5 = vector.load %arg2[%c0_3, %c0_4] : memref<32x8xf32, #tpu.memory_space<vmem>>, vector<32x8xf32>
    %c8 = arith.constant 8 : index
    %c0_5 = arith.constant 0 : index
    %6 = vector.load %arg3[%c8, %c0_5] : memref<56x128xf32, #tpu.memory_space<vmem>>, vector<8x128xf32>
    %7 = arith.truncf %5 : vector<32x8xf32> to vector<32x8xbf16>
    %8 = arith.truncf %6 : vector<8x128xf32> to vector<8x128xbf16>
    %cst = arith.constant dense<0.000000e+00> : vector<32x128xf32>
    %9 = tpu.matmul %7, %8, %cst {dimension_numbers = #tpu.dot_dimension_numbers<[1], [0], [0], [1], [0, 0, 1, 1], [], []>} : vector<32x8xbf16>, vector<8x128xbf16>, vector<32x128xf32> -> vector<32x128xf32>
    %10 = arith.addf %4, %9 : vector<32x128xf32>
    %c32 = arith.constant 32 : index
    %c0_6 = arith.constant 0 : index
    %11 = vector.load %arg3[%c32, %c0_6] : memref<56x128xf32, #tpu.memory_space<vmem>>, vector<1x128xf32>
    %12 = vector.broadcast %11 : vector<1x128xf32> to vector<32x128xf32>
    %13 = arith.addf %10, %12 : vector<32x128xf32>
    %cst_7 = arith.constant 0.000000e+00 : f32
    %14 = vector.broadcast %cst_7 : f32 to vector<32x128xf32>
    %15 = arith.maximumf %13, %14 : vector<32x128xf32>
    %16 = vector.extract_strided_slice %15 {offsets = [0, 0], sizes = [32, 8], strides = [1, 1]} : vector<32x128xf32> to vector<32x8xf32>
    %c16 = arith.constant 16 : index
    %c0_8 = arith.constant 0 : index
    %17 = vector.load %arg3[%c16, %c0_8] : memref<56x128xf32, #tpu.memory_space<vmem>>, vector<8x128xf32>
    %18 = arith.truncf %16 : vector<32x8xf32> to vector<32x8xbf16>
    %19 = arith.truncf %17 : vector<8x128xf32> to vector<8x128xbf16>
    %cst_9 = arith.constant dense<0.000000e+00> : vector<32x128xf32>
    %20 = tpu.matmul %18, %19, %cst_9 {dimension_numbers = #tpu.dot_dimension_numbers<[1], [0], [0], [1], [0, 0, 1, 1], [], []>} : vector<32x8xbf16>, vector<8x128xbf16>, vector<32x128xf32> -> vector<32x128xf32>
    %c40 = arith.constant 40 : index
    %c0_10 = arith.constant 0 : index
    %21 = vector.load %arg3[%c40, %c0_10] : memref<56x128xf32, #tpu.memory_space<vmem>>, vector<1x128xf32>
    %22 = vector.broadcast %21 : vector<1x128xf32> to vector<32x128xf32>
    %23 = arith.addf %20, %22 : vector<32x128xf32>
    %cst_11 = arith.constant 0.000000e+00 : f32
    %24 = vector.broadcast %cst_11 : f32 to vector<32x128xf32>
    %25 = arith.maximumf %23, %24 : vector<32x128xf32>
    %26 = vector.extract_strided_slice %25 {offsets = [0, 0], sizes = [32, 8], strides = [1, 1]} : vector<32x128xf32> to vector<32x8xf32>
    %c24 = arith.constant 24 : index
    %c0_12 = arith.constant 0 : index
    %27 = vector.load %arg3[%c24, %c0_12] : memref<56x128xf32, #tpu.memory_space<vmem>>, vector<8x128xf32>
    %28 = arith.truncf %26 : vector<32x8xf32> to vector<32x8xbf16>
    %29 = arith.truncf %27 : vector<8x128xf32> to vector<8x128xbf16>
    %cst_13 = arith.constant dense<0.000000e+00> : vector<32x128xf32>
    %30 = tpu.matmul %28, %29, %cst_13 {dimension_numbers = #tpu.dot_dimension_numbers<[1], [0], [0], [1], [0, 0, 1, 1], [], []>} : vector<32x8xbf16>, vector<8x128xbf16>, vector<32x128xf32> -> vector<32x128xf32>
    %c48 = arith.constant 48 : index
    %c0_14 = arith.constant 0 : index
    %31 = vector.load %arg3[%c48, %c0_14] : memref<56x128xf32, #tpu.memory_space<vmem>>, vector<1x128xf32>
    %32 = vector.broadcast %31 : vector<1x128xf32> to vector<32x128xf32>
    %33 = arith.addf %30, %32 : vector<32x128xf32>
    %34 = vector.extract_strided_slice %33 {offsets = [0, 0], sizes = [32, 1], strides = [1, 1]} : vector<32x128xf32> to vector<32x1xf32>
    %c0_15 = arith.constant 0 : index
    %c0_16 = arith.constant 0 : index
    %35 = vector.load %arg4[%c0_15, %c0_16] : memref<32x1xf32, #tpu.memory_space<vmem>>, vector<32x1xf32>
    tpu.vector_store %arg4[%c0_15, %c0_16], %34 {strides = array<i32>} : memref<32x1xf32, #tpu.memory_space<vmem>>, vector<32x1xf32>,
    return
  }
  func.func @transform_0(%arg0: i32) -> (i32, i32) {
    %c0_i32 = arith.constant 0 : i32
    %c0_i32_0 = arith.constant 0 : i32
    return %arg0, %c0_i32 : i32, i32
  }
  func.func @transform_1(%arg0: i32) -> (i32, i32) {
    %c0_i32 = arith.constant 0 : i32
    %c0_i32_0 = arith.constant 0 : i32
    return %arg0, %c0_i32 : i32, i32
  }
  func.func @transform_2(%arg0: i32) -> (i32, i32) {
    %c0_i32 = arith.constant 0 : i32
    %c0_i32_0 = arith.constant 0 : i32
    %c0_i32_1 = arith.constant 0 : i32
    return %c0_i32, %c0_i32_0 : i32, i32
  }
  func.func @transform_3(%arg0: i32) -> (i32, i32) {
    %c0_i32 = arith.constant 0 : i32
    %c0_i32_0 = arith.constant 0 : i32
    return %arg0, %c0_i32 : i32, i32
  }
}

</mosaic_0001>

<llo_original>
// kernel: forward.1
$region0: #{forward.1}
  #allocation0 [shape = 'u32[]', space=smem, size = 0x4, offset = 0x4, fixed_abs, tag = 'smem constant byte address 0x4 - core index']
  #allocation1 [shape = 'u32[144,128]{1,0:T(1,128)}', space=vmem, size = 0x12000, scoped, tag = 'internal scratch']
  %s0 = inlined_call_operand.vmem [shape: f32[64,1], index: 0, kind: input, shape index: {}]
  %s1 = inlined_call_operand.vmem [shape: f32[64,8], index: 1, kind: input, shape index: {}]
  %s2 = inlined_call_operand.vmem [shape: f32[56,128], index: 2, kind: input, shape index: {}]
  %s3 = inlined_call_operand.vmem [shape: f32[64,1], index: 3, kind: output, shape index: {}]
  %s4 = sld [smem:[#allocation0]]
  $region45: #{forward.1} parent=0
    _
  %s6 = ssub.s32 1, %s4
  %s7 = scalar_select 0, %s6, %s4
  loop: start=0, step=1, limit=4
  $region2: #{forward.1} parent=0 // loop_pre_header
    _
  $region3: #{forward.1} parent=0 // loop_header
    %s9 = sphi 0, %s13
    %p10 = scmp.ge.s32.totalorder %s9, 4
    %s19 = sphi 0, %s21
    %s22 = sphi 0, %s19
    %s23 = sphi 0, %s22
    %s39 = sphi 0, %s23
    %s45 = sphi 0, %s47
    %s48 = sphi 0, %s45
    %s49 = sphi 0, %s48
    %s65 = sphi 0, %s49
    %s69 = sphi 0, %s69
    %s71 = sphi 0, %s69
    %s72 = sphi 0, %s71
    %s86 = sphi 0, %s72
    %s92 = sphi 0, %s94
    %s95 = sphi 0, %s92
    %s96 = sphi 0, %s95
    %s112 = sphi 0, %s96
  $region4: #{forward.1} parent=0 // loop_header_branch
    %12 = sbr.rel (%p10) target = $region8
  $region5: #{forward.1} parent=0 // loop_body
    %s14 = ssub.s32 %s9, 1
    %s15 = ssub.s32 %s9, 2
    %s16 = sadd.s32 %s9, 1
    %s17 = ssub.s32 %s9, %s16
    %p18 = scmp.eq.s32.totalorder %s17, 0
    %s20 = sadd.s32 %s19, 1
    %s21 = scalar_select %p18, %s19, %s20
    %p24 = pneg %p18
    %p25 = scmp.eq.s32.totalorder %s9, 1
    %p26 = por %p24, %p25
    %p27 = scmp.ne.s32.totalorder %s19, %s22
    %p28 = scmp.eq.s32.totalorder %s9, 0
    %p29 = por %p27, %p28
    %p30 = scmp.ne.s32.totalorder %s19, %s22
    %p31 = scmp.eq.s32.totalorder %s14, 1
    %p32 = por %p30, %p31
    %p33 = scmp.ne.s32.totalorder %s22, %s23
    %p34 = scmp.eq.s32.totalorder %s14, 0
    %p35 = por %p33, %p34
    %p36 = scmp.ne.s32.totalorder %s22, %s23
    %p37 = scmp.eq.s32.totalorder %s15, 1
    %p38 = por %p36, %p37
    %p40 = scmp.ne.s32.totalorder %s23, %s39
    %p41 = scmp.eq.s32.totalorder %s15, 0
    %p42 = por %p40, %p41
    %s43 = ssub.s32 %s9, %s16
    %p44 = scmp.eq.s32.totalorder %s43, 0
    %s46 = sadd.s32 %s45, 1
    %s47 = scalar_select %p44, %s45, %s46
    %p50 = pneg %p44
    %p51 = scmp.eq.s32.totalorder %s9, 1
    %p52 = por %p50, %p51
    %p53 = scmp.ne.s32.totalorder %s45, %s48
    %p54 = scmp.eq.s32.totalorder %s9, 0
    %p55 = por %p53, %p54
    %p56 = scmp.ne.s32.totalorder %s45, %s48
    %p57 = scmp.eq.s32.totalorder %s14, 1
    %p58 = por %p56, %p57
    %p59 = scmp.ne.s32.totalorder %s48, %s49
    %p60 = scmp.eq.s32.totalorder %s14, 0
    %p61 = por %p59, %p60
    %p62 = scmp.ne.s32.totalorder %s48, %s49
    %p63 = scmp.eq.s32.totalorder %s15, 1
    %p64 = por %p62, %p63
    %p66 = scmp.ne.s32.totalorder %s49, %s65
    %p67 = scmp.eq.s32.totalorder %s15, 0
    %p68 = por %p66, %p67
    %s70 = sadd.s32 %s69, 1
    %p73 = scmp.eq.s32.totalorder %s9, 1
    %p74 = scmp.ne.s32.totalorder %s69, %s71
    %p75 = scmp.eq.s32.totalorder %s9, 0
    %p76 = por %p74, %p75
    %p77 = scmp.ne.s32.totalorder %s69, %s71
    %p78 = scmp.eq.s32.totalorder %s14, 1
    %p79 = por %p77, %p78
    %p80 = scmp.ne.s32.totalorder %s71, %s72
    %p81 = scmp.eq.s32.totalorder %s14, 0
    %p82 = por %p80, %p81
    %p83 = scmp.ne.s32.totalorder %s71, %s72
    %p84 = scmp.eq.s32.totalorder %s15, 1
    %p85 = por %p83, %p84
    %p87 = scmp.ne.s32.totalorder %s72, %s86
    %p88 = scmp.eq.s32.totalorder %s15, 0
    %p89 = por %p87, %p88
    %s90 = ssub.s32 %s9, %s16
    %p91 = scmp.eq.s32.totalorder %s90, 0
    %s93 = sadd.s32 %s92, 1
    %s94 = scalar_select %p91, %s92, %s93
    %p97 = pneg %p91
    %p98 = scmp.eq.s32.totalorder %s9, 1
    %p99 = por %p97, %p98
    %p100 = scmp.ne.s32.totalorder %s92, %s95
    %p101 = scmp.eq.s32.totalorder %s9, 0
    %p102 = por %p100, %p101
    %p103 = scmp.ne.s32.totalorder %s92, %s95
    %p104 = scmp.eq.s32.totalorder %s14, 1
    %p105 = por %p103, %p104
    %p106 = scmp.ne.s32.totalorder %s95, %s96
    %p107 = scmp.eq.s32.totalorder %s14, 0
    %p108 = por %p106, %p107
    %p109 = scmp.ne.s32.totalorder %s95, %s96
    %p110 = scmp.eq.s32.totalorder %s15, 1
    %p111 = por %p109, %p110
    %p113 = scmp.ne.s32.totalorder %s96, %s112
    %p114 = scmp.eq.s32.totalorder %s15, 0
    %p115 = por %p113, %p114
    %p116 = scmp.le.s32.totalorder 1, %s9
    %p117 = scmp.lt.s32.totalorder %s9, 3
    %p118 = pnand %p116, %p117
    %p119 = pneg %p118
    // Predicated region
    $region9: #{forward.1} parent=5 // pred_check
      _
    $region10: #{forward.1} parent=5 // pred_check_branch
      %121 = sbr.rel (%p118) target = $region12
    $region11: #{forward.1} parent=5 // pred_region
      %s122 = ssub.s32 %s9, 1
      // Predicated region
      $region13: #{forward.1} parent=11 // pred_check
        %p123 = pneg %p82
      $region14: #{forward.1} parent=11 // pred_check_branch
        %125 = sbr.rel (%p123) target = $region16
      $region15: #{forward.1} parent=11 // pred_region
        _
      $region16: #{forward.1} parent=11 // pred_fallthru
        _
    $region12: #{forward.1} parent=5 // pred_fallthru
      _
    %p126 = scmp.lt.s32.totalorder %s9, 2
    // Predicated region
    $region17: #{forward.1} parent=5 // pred_check
      %p127 = pneg %p126
    $region18: #{forward.1} parent=5 // pred_check_branch
      %129 = sbr.rel (%p127) target = $region20
    $region19: #{forward.1} parent=5 // pred_region
      // Predicated region
      $region21: #{forward.1} parent=19 // pred_check
        %p130 = pneg %p29
      $region22: #{forward.1} parent=19 // pred_check_branch
        %132 = sbr.rel (%p130) target = $region24
      $region23: #{forward.1} parent=19 // pred_region
        %s133 = smul.u32 4, %s9
        %p134 = scmp.lt.s32.totalorder %s133, 7
        %s135 = scalar_select %p134, %s133, 7
        %s136 = smul.addr %s135, 8
        %s137 = scalar_lea.vmem %s0, %s136
        %s138 = smul.u32 4, %s9
      $region24: #{forward.1} parent=19 // pred_fallthru
        _
      // Predicated region
      $region25: #{forward.1} parent=19 // pred_check
        %p139 = pneg %p55
      $region26: #{forward.1} parent=19 // pred_check_branch
        %141 = sbr.rel (%p139) target = $region28
      $region27: #{forward.1} parent=19 // pred_region
        %s142 = smul.u32 4, %s9
        %p143 = scmp.lt.s32.totalorder %s142, 7
        %s144 = scalar_select %p143, %s142, 7
        %s145 = smul.addr %s144, 8
        %s146 = scalar_lea.vmem %s1, %s145
        %s147 = smul.u32 4, %s9
      $region28: #{forward.1} parent=19 // pred_fallthru
        _
    $region20: #{forward.1} parent=5 // pred_fallthru
      _
    %p148 = scmp.le.s32.totalorder 1, %s9
    %p149 = scmp.lt.s32.totalorder %s9, 3
    %p150 = pnand %p148, %p149
    %p151 = pneg %p150
    // Predicated region
    $region29: #{forward.1} parent=5 // pred_check
      _
    $region30: #{forward.1} parent=5 // pred_check_branch
      %153 = sbr.rel (%p150) target = $region32
    $region31: #{forward.1} parent=5 // pred_region
      %s154 = ssub.s32 %s9, 1
      %s155 = smul.u32 4, %s14
      %p156 = scmp.lt.s32.totalorder %s155, 7
      %s157 = scalar_select %p156, %s155, 7
      %s158 = smul.addr %s157, 8
      %s159 = scalar_lea.vmem %s0, %s158
      %p160 = pneg %p35
      %p161 = pneg %p32
      %s162 = smul.u32 4, %s14
      %p163 = scmp.lt.s32.totalorder %s162, 7
      %s164 = scalar_select %p163, %s162, 7
      %s165 = smul.addr %s164, 8
      %s166 = scalar_lea.vmem %s1, %s165
      %p167 = pneg %p61
      %p168 = pneg %p58
      %p169 = pneg %p82
      %p170 = pneg %p79
      %p171 = pneg %p108
      %p172 = pneg %p105
      %s173 = smul.u32 4, %s14
      %p174 = scmp.lt.s32.totalorder %s173, 7
      %s175 = scalar_select %p174, %s173, 7
      %s176 = smul.addr %s175, 8
      %s177 = scalar_lea.vmem %s3, %s176
      %s178 = smul.u32 4, %s14
      %p179 = scmp.lt.s32.totalorder %s178, 7
      %s180 = scalar_select %p179, %s178, 7
      %s181 = smul.addr %s180, 8
      %s182 = scalar_lea.vmem %s0, %s181
      %s183 = smul.u32 4, %s14
      %s184 = smul.u32 4, %s14
      %p185 = scmp.lt.s32.totalorder %s184, 7
      %s186 = scalar_select %p185, %s184, 7
      %s187 = smul.addr %s186, 8
      %s188 = scalar_lea.vmem %s1, %s187
      %s189 = smul.u32 4, %s14
      %s190 = smul.u32 4, %s14
      %p191 = scmp.lt.s32.totalorder %s190, 7
      %s192 = scalar_select %p191, %s190, 7
      %s193 = smul.addr %s192, 8
      %s194 = scalar_lea.vmem %s3, %s193
      %s195 = smul.u32 4, %s14
      %v197 = vld [vmem:[%s182] sm:$0xff]
      %v198 = vld [vmem:[%s182 + $0x8] sm:$0xff]
      %v199 = vld [vmem:[%s182 + $0x10] sm:$0xff]
      %v200 = vld [vmem:[%s182 + $0x18] sm:$0xff]
      %v201 = vld [vmem:[%s2] sm:$0x1]
      %203 = vset.pattern.permute.xlu0 0
      %204 = vperm.xlu0 %203, %v197
      %v205 = vpop.permute.xlu0 %204
      %208 = vset.pattern.permute.xlu0 0
      %209 = vperm.xlu0 %208, %v198
      %v210 = vpop.permute.xlu0 %209
      %213 = vset.pattern.permute.xlu0 0
      %214 = vperm.xlu0 %213, %v199
      %v215 = vpop.permute.xlu0 %214
      %218 = vset.pattern.permute.xlu0 0
      %219 = vperm.xlu0 %218, %v200
      %v220 = vpop.permute.xlu0 %219
      %v222 = vlaneseq
      %v223 = vshrl.u32 %v222, 7
      %v224 = vsub.s32 0, %v223
      %v225 = vrot.slane %v201, %v224
      %v226 = vmul.f32 %v205, %v225
      %v227 = vmul.f32 %v210, %v225
      %v228 = vmul.f32 %v215, %v225
      %v229 = vmul.f32 %v220, %v225
      %v230 = vld [vmem:[%s188] sm:$0xff]
      %v231 = vld [vmem:[%s188 + $0x8] sm:$0xff]
      %v232 = vld [vmem:[%s188 + $0x10] sm:$0xff]
      %v233 = vld [vmem:[%s188 + $0x18] sm:$0xff]
      %v234 = vld [vmem:[%s2 + $0x8] sm:$0xff]
      %v235 = vpack.c.bf16 %v231, %v230
      %v236 = vpack.c.bf16 %v233, %v232
      %v237 = vpack.c.bf16 %v234, %v234
      %vm238 = vcmask 64512
      %v240 = vsel %vm238, %v235, 0
      %v243 = vsel %vm238, %v236, 0
      %vm245 = vcmask 1043456
      %v247 = vsel %vm245, %v237, 0
      %249 = vmatprep.subr.bf16.mxu0 0
      %250 = vmatpush1.bf16.msra.mxu0 %v247
      %251 = vmatprep.subr.bf16.mxu0 0
      %252 = vmatpush1.bf16.msra.mxu0 0
      %253 = vmatprep.subr.bf16.mxu0 0
      %254 = vmatpush1.bf16.msra.mxu0 0
      %255 = vmatprep.subr.bf16.mxu0 0
      %256 = vmatpush1.bf16.msra.mxu0 0
      %257 = vmatprep.subr.bf16.mxu0 0
      %258 = vmatpush1.bf16.msra.mxu0 0
      %259 = vmatprep.subr.bf16.mxu0 0
      %260 = vmatpush1.bf16.msra.mxu0 0
      %261 = vmatprep.subr.bf16.mxu0 0
      %262 = vmatpush1.bf16.msra.mxu0 0
      %263 = vmatprep.subr.bf16.mxu0 0
      %264 = vmatpush1.bf16.msra.mxu0 0
      %265 = vmatprep.subr.bf16.mxu0 0
      %266 = vmatpush1.bf16.msra.mxu0 0
      %267 = vmatprep.subr.bf16.mxu0 0
      %268 = vmatpush1.bf16.msra.mxu0 0
      %269 = vmatprep.subr.bf16.mxu0 0
      %270 = vmatpush1.bf16.msra.mxu0 0
      %271 = vmatprep.subr.bf16.mxu0 0
      %272 = vmatpush1.bf16.msra.mxu0 0
      %273 = vmatprep.subr.bf16.mxu0 0
      %274 = vmatpush1.bf16.msra.mxu0 0
      %275 = vmatprep.subr.bf16.mxu0 0
      %276 = vmatpush1.bf16.msra.mxu0 0
      %277 = vmatprep.subr.bf16.mxu0 0
      %278 = vmatpush1.bf16.msra.mxu0 0
      %279 = vmatprep.subr.bf16.mxu0 0
      %280 = vmatpush1.bf16.msra.mxu0 0
      %281 = vmatprep.mubr.bf16.mxu0 0
      %282 = vmatmul.mubr.bf16.gmra.mrb[0].mxu0 %v240
      %v283 = vpop.f32.mrb[0].mxu0
      %v284 = vadd.f32 0.0, %v283
      %v285 = vpop.f32.mrb[0].mxu0
      %v286 = vpop.f32.mrb[0].mxu0
      %v287 = vadd.f32 0.0, %v286
      %v288 = vpop.f32.mrb[0].mxu0
      %289 = vmatprep.mubr.bf16.mxu0 0
      %290 = vmatmul.mubr.bf16.gmra.mrb[0].mxu0 %v243
      %v291 = vpop.f32.mrb[0].mxu0
      %v292 = vadd.f32 0.0, %v291
      %v293 = vpop.f32.mrb[0].mxu0
      %v294 = vpop.f32.mrb[0].mxu0
      %v295 = vadd.f32 0.0, %v294
      %v296 = vpop.f32.mrb[0].mxu0
      %297 = vdwg.mxu0
      %v298 = vadd.f32 %v226, %v284
      %v299 = vadd.f32 %v227, %v287
      %v300 = vadd.f32 %v228, %v292
      %v301 = vadd.f32 %v229, %v295
      %v302 = vld [vmem:[%s2 + $0x20] sm:$0x1]
      %v303 = vlaneseq
      %v304 = vshrl.u32 %v303, 7
      %v305 = vsub.s32 0, %v304
      %v306 = vrot.slane %v302, %v305
      %v307 = vadd.f32 %v298, %v306
      %v308 = vadd.f32 %v299, %v306
      %v309 = vadd.f32 %v300, %v306
      %v310 = vadd.f32 %v301, %v306
      %v311 = vmax.f32 %v307, 0.0
      %v312 = vmax.f32 %v308, 0.0
      %v313 = vmax.f32 %v309, 0.0
      %v314 = vmax.f32 %v310, 0.0
      %v315 = vld [vmem:[%s2 + $0x10] sm:$0xff]
      %v316 = vpack.c.bf16 %v312, %v311
      %v317 = vpack.c.bf16 %v314, %v313
      %v318 = vpack.c.bf16 %v315, %v315
      %v319 = vld [vmem:[%s2 + $0x28] sm:$0x1]
      %v320 = vlaneseq
      %v321 = vshrl.u32 %v320, 7
      %v322 = vsub.s32 0, %v321
      %v323 = vrot.slane %v319, %v322
      %v325 = vsel %vm238, %v316, 0
      %v328 = vsel %vm238, %v317, 0
      %v331 = vsel %vm245, %v318, 0
      %333 = vmatprep.subr.bf16.mxu0 0
      %334 = vmatpush1.bf16.msra.mxu0 %v331
      %335 = vmatprep.subr.bf16.mxu0 0
      %336 = vmatpush1.bf16.msra.mxu0 0
      %337 = vmatprep.subr.bf16.mxu0 0
      %338 = vmatpush1.bf16.msra.mxu0 0
      %339 = vmatprep.subr.bf16.mxu0 0
      %340 = vmatpush1.bf16.msra.mxu0 0
      %341 = vmatprep.subr.bf16.mxu0 0
      %342 = vmatpush1.bf16.msra.mxu0 0
      %343 = vmatprep.subr.bf16.mxu0 0
      %344 = vmatpush1.bf16.msra.mxu0 0
      %345 = vmatprep.subr.bf16.mxu0 0
      %346 = vmatpush1.bf16.msra.mxu0 0
      %347 = vmatprep.subr.bf16.mxu0 0
      %348 = vmatpush1.bf16.msra.mxu0 0
      %349 = vmatprep.subr.bf16.mxu0 0
      %350 = vmatpush1.bf16.msra.mxu0 0
      %351 = vmatprep.subr.bf16.mxu0 0
      %352 = vmatpush1.bf16.msra.mxu0 0
      %353 = vmatprep.subr.bf16.mxu0 0
      %354 = vmatpush1.bf16.msra.mxu0 0
      %355 = vmatprep.subr.bf16.mxu0 0
      %356 = vmatpush1.bf16.msra.mxu0 0
      %357 = vmatprep.subr.bf16.mxu0 0
      %358 = vmatpush1.bf16.msra.mxu0 0
      %359 = vmatprep.subr.bf16.mxu0 0
      %360 = vmatpush1.bf16.msra.mxu0 0
      %361 = vmatprep.subr.bf16.mxu0 0
      %362 = vmatpush1.bf16.msra.mxu0 0
      %363 = vmatprep.subr.bf16.mxu0 0
      %364 = vmatpush1.bf16.msra.mxu0 0
      %365 = vmatprep.mubr.bf16.mxu0 0
      %366 = vmatmul.mubr.bf16.gmra.mrb[0].mxu0 %v325
      %v367 = vpop.f32.mrb[0].mxu0
      %v368 = vadd.f32 %v323, %v367
      %v369 = vpop.f32.mrb[0].mxu0
      %v370 = vpop.f32.mrb[0].mxu0
      %v371 = vadd.f32 %v323, %v370
      %v372 = vpop.f32.mrb[0].mxu0
      %373 = vmatprep.mubr.bf16.mxu0 0
      %374 = vmatmul.mubr.bf16.gmra.mrb[0].mxu0 %v328
      %v375 = vpop.f32.mrb[0].mxu0
      %v376 = vadd.f32 %v323, %v375
      %v377 = vpop.f32.mrb[0].mxu0
      %v378 = vpop.f32.mrb[0].mxu0
      %v379 = vadd.f32 %v323, %v378
      %v380 = vpop.f32.mrb[0].mxu0
      %381 = vdwg.mxu0
      %v382 = vmax.f32 %v368, 0.0
      %v383 = vmax.f32 %v371, 0.0
      %v384 = vmax.f32 %v376, 0.0
      %v385 = vmax.f32 %v379, 0.0
      %v386 = vld [vmem:[%s2 + $0x18] sm:$0xff]
      %v387 = vpack.c.bf16 %v383, %v382
      %v388 = vpack.c.bf16 %v385, %v384
      %v389 = vpack.c.bf16 %v386, %v386
      %v390 = vld [vmem:[%s2 + $0x30] sm:$0x1]
      %v391 = vlaneseq
      %v392 = vshrl.u32 %v391, 7
      %v393 = vsub.s32 0, %v392
      %v394 = vrot.slane %v390, %v393
      %v396 = vsel %vm238, %v387, 0
      %v399 = vsel %vm238, %v388, 0
      %v402 = vsel %vm245, %v389, 0
      %404 = vmatprep.subr.bf16.mxu0 0
      %405 = vmatpush1.bf16.msra.mxu0 %v402
      %406 = vmatprep.subr.bf16.mxu0 0
      %407 = vmatpush1.bf16.msra.mxu0 0
      %408 = vmatprep.subr.bf16.mxu0 0
      %409 = vmatpush1.bf16.msra.mxu0 0
      %410 = vmatprep.subr.bf16.mxu0 0
      %411 = vmatpush1.bf16.msra.mxu0 0
      %412 = vmatprep.subr.bf16.mxu0 0
      %413 = vmatpush1.bf16.msra.mxu0 0
      %414 = vmatprep.subr.bf16.mxu0 0
      %415 = vmatpush1.bf16.msra.mxu0 0
      %416 = vmatprep.subr.bf16.mxu0 0
      %417 = vmatpush1.bf16.msra.mxu0 0
      %418 = vmatprep.subr.bf16.mxu0 0
      %419 = vmatpush1.bf16.msra.mxu0 0
      %420 = vmatprep.subr.bf16.mxu0 0
      %421 = vmatpush1.bf16.msra.mxu0 0
      %422 = vmatprep.subr.bf16.mxu0 0
      %423 = vmatpush1.bf16.msra.mxu0 0
      %424 = vmatprep.subr.bf16.mxu0 0
      %425 = vmatpush1.bf16.msra.mxu0 0
      %426 = vmatprep.subr.bf16.mxu0 0
      %427 = vmatpush1.bf16.msra.mxu0 0
      %428 = vmatprep.subr.bf16.mxu0 0
      %429 = vmatpush1.bf16.msra.mxu0 0
      %430 = vmatprep.subr.bf16.mxu0 0
      %431 = vmatpush1.bf16.msra.mxu0 0
      %432 = vmatprep.subr.bf16.mxu0 0
      %433 = vmatpush1.bf16.msra.mxu0 0
      %434 = vmatprep.subr.bf16.mxu0 0
      %435 = vmatpush1.bf16.msra.mxu0 0
      %436 = vmatprep.mubr.bf16.mxu0 0
      %437 = vmatmul.mubr.bf16.gmra.mrb[0].mxu0 %v396
      %v438 = vpop.f32.mrb[0].mxu0
      %v439 = vadd.f32 %v394, %v438
      %v440 = vpop.f32.mrb[0].mxu0
      %v441 = vpop.f32.mrb[0].mxu0
      %v442 = vadd.f32 %v394, %v441
      %v443 = vpop.f32.mrb[0].mxu0
      %444 = vmatprep.mubr.bf16.mxu0 0
      %445 = vmatmul.mubr.bf16.gmra.mrb[0].mxu0 %v399
      %v446 = vpop.f32.mrb[0].mxu0
      %v447 = vadd.f32 %v394, %v446
      %v448 = vpop.f32.mrb[0].mxu0
      %v449 = vpop.f32.mrb[0].mxu0
      %v450 = vadd.f32 %v394, %v449
      %v451 = vpop.f32.mrb[0].mxu0
      %452 = vdwg.mxu0
      %vm453 = vcmask 7168
      %454 = vst.msk [vmem:[%s194] sm:$0xff] %vm453, %v439
      %455 = vst.msk [vmem:[%s194 + $0x8] sm:$0xff] %vm453, %v442
      %456 = vst.msk [vmem:[%s194 + $0x10] sm:$0xff] %vm453, %v447
      %457 = vst.msk [vmem:[%s194 + $0x18] sm:$0xff] %vm453, %v450
      %s458 = smul.u32 4, %s14
      %p459 = scmp.lt.s32.totalorder %s458, 7
      %s460 = scalar_select %p459, %s458, 7
      %s461 = smul.addr %s460, 8
      %s462 = scalar_lea.vmem %s3, %s461
      // Predicated region
      $region33: #{forward.1} parent=31 // pred_check
        %p463 = pneg %p105
      $region34: #{forward.1} parent=31 // pred_check_branch
        %465 = sbr.rel (%p463) target = $region36
      $region35: #{forward.1} parent=31 // pred_region
        %s466 = smul.u32 4, %s14
      $region36: #{forward.1} parent=31 // pred_fallthru
        _
    $region32: #{forward.1} parent=5 // pred_fallthru
      _
    %p467 = scmp.le.s32.totalorder 2, %s9
    // Predicated region
    $region37: #{forward.1} parent=5 // pred_check
      %p468 = pneg %p467
    $region38: #{forward.1} parent=5 // pred_check_branch
      %470 = sbr.rel (%p468) target = $region40
    $region39: #{forward.1} parent=5 // pred_region
      %s471 = ssub.s32 %s9, 2
      // Predicated region
      $region41: #{forward.1} parent=39 // pred_check
        %p472 = pneg %p111
      $region42: #{forward.1} parent=39 // pred_check_branch
        %474 = sbr.rel (%p472) target = $region44
      $region43: #{forward.1} parent=39 // pred_region
        %s475 = smul.u32 4, %s15
        %p476 = scmp.lt.s32.totalorder %s475, 7
        %s477 = scalar_select %p476, %s475, 7
        %s478 = smul.addr %s477, 8
        %s479 = scalar_lea.vmem %s3, %s478
      $region44: #{forward.1} parent=39 // pred_fallthru
        _
    $region40: #{forward.1} parent=5 // pred_fallthru
      _
  $region6: #{forward.1} parent=0 // loop_footer
    %s13 = sadd.s32 1, %s9
  $region7: #{forward.1} parent=0 // loop_footer_branch
    %8 = sbr.rel target = $region3
  $region8: #{forward.1} parent=0 // loop_exit
    _

</llo_original>
